<compile_context>
chip_gen: v7x
topology: tpu7x:2x2x1
jax: 0.10.0
libtpu: 0.0.40
codegen_flags: <defaults>
</compile_context>

<pallas_src>
import jax
import jax.numpy as jnp
from jax import lax
from jax.experimental import pallas as pl
from jax.experimental.pallas import tpu as pltpu


def _tse_kernel(x_ref, w1_ref, b1_ref, w2_ref, b2_ref, o_ref):
    # x_ref: (TB, C, N) block of TB batch rows.
    c = x_ref.shape[1]

    # Channel mean (dim=1) accumulated in f32.  Do not keep the full x block
    # live across the matmuls -- it is re-read from VMEM in the epilogue.
    x_f = jnp.sum(x_ref[...], axis=1, dtype=jnp.float32) * (1.0 / c)     # (TB, N)

    # Linear1 + sigmoid: y = x_f @ W1^T + b1  (W in PyTorch (out, in) layout;
    # contract dim 1 of both operands -> no transpose needed).
    h = lax.dot_general(
        x_f, w1_ref[...],
        dimension_numbers=(((1,), (1,)), ((), ())),
        preferred_element_type=jnp.float32,
    ) + b1_ref[...]
    h = jax.nn.sigmoid(h)

    # Linear2 + sigmoid.
    s = lax.dot_general(
        h, w2_ref[...],
        dimension_numbers=(((1,), (1,)), ((), ())),
        preferred_element_type=jnp.float32,
    ) + b2_ref[...]
    s = jax.nn.sigmoid(s)                                                # (TB, N)

    # unsqueeze(-2) + broadcast multiply over channels, streaming from x_ref.
    gate = s.astype(o_ref.dtype)
    o_ref[...] = (x_ref[...] * gate[:, None, :]).astype(o_ref.dtype)


def temporal_squeeze_excitation(x, w1, b1, w2, b2, *, block_b=None):
    """x: (B, C, N).  w1, w2: (N, N) in PyTorch (out, in) layout.  b1, b2: (N,)."""
    B, C, N = x.shape
    x_itemsize = jnp.dtype(x.dtype).itemsize
    w_itemsize = jnp.dtype(w1.dtype).itemsize

    # ---- per-generation VMEM budget --------------------------------------
    try:
        phys_vmem = int(pltpu.get_tpu_info().vmem_capacity_bytes)
    except Exception:
        phys_vmem = 64 * 1024 * 1024          # conservative default (v7x per-core)
    # Scoped-VMEM limit requested from Mosaic (~75% of physical, clamped).
    vmem_limit = max(32 * 1024 * 1024, min(phys_vmem * 3 // 4, 112 * 1024 * 1024))

    # Grid-invariant weight/bias buffers: budget the worst case of 2 pipeline
    # buffers even though single-buffering is requested below.
    weight_bytes = (2 * N * N + 2 * N) * w_itemsize
    mosaic_headroom = 2 * 1024 * 1024

    bytes_per_row = C * N * x_itemsize        # one batch row of x (== one of out)

    if block_b is None:
        usable = vmem_limit - 2 * weight_bytes - mosaic_headroom
        tb_cap = max(1, usable // (4 * bytes_per_row))           # 2x-buffered x + out
        tb_target = max(1, (4 * 1024 * 1024) // bytes_per_row)   # ~4 MiB x tile
        block_b = int(max(1, min(B, tb_target, tb_cap)))
    # Ensure >= 2 steps on the parallel batch axis so both v7x TensorCores work.
    if B > 1 and pl.cdiv(B, block_b) < 2:
        block_b = int(pl.cdiv(B, 2))

    grid = (pl.cdiv(B, block_b),)             # ragged last block handled by Pallas masking

    b1r = b1.reshape(1, N)
    b2r = b2.reshape(1, N)

    cost = pl.CostEstimate(
        flops=int(4 * B * N * N + 2 * B * C * N),
        transcendentals=int(2 * B * N),
        bytes_accessed=int(2 * B * C * N * x_itemsize + weight_bytes),
    )

    x_spec = pl.BlockSpec((block_b, C, N), lambda b: (b, 0, 0))
    out_spec = pl.BlockSpec((block_b, C, N), lambda b: (b, 0, 0))

    def build(single_buffer_weights):
        if single_buffer_weights:
            def w_spec(shape):
                return pl.BlockSpec(shape, lambda b: (0,) * len(shape),
                                    pipeline_mode=pl.Buffered(1))
        else:
            def w_spec(shape):
                return pl.BlockSpec(shape, lambda b: (0,) * len(shape))
        return pl.pallas_call(
            _tse_kernel,
            out_shape=jax.ShapeDtypeStruct((B, C, N), x.dtype),
            grid_spec=pltpu.PrefetchScalarGridSpec(
                num_scalar_prefetch=0,
                grid=grid,
                in_specs=[
                    x_spec,              # x block (TB, C, N)
                    w_spec((N, N)),      # W1 (out, in), full
                    w_spec((1, N)),      # b1
                    w_spec((N, N)),      # W2 (out, in), full
                    w_spec((1, N)),      # b2
                ],
                out_specs=out_spec,
            ),
            compiler_params=pltpu.CompilerParams(
                dimension_semantics=("parallel",),
                vmem_limit_bytes=int(vmem_limit),
            ),
            cost_estimate=cost,
        )

    try:
        # Single-buffer the grid-invariant weights (halves their VMEM footprint).
        return build(True)(x, w1, b1r, w2, b2r)
    except Exception:
        # pipeline_mode=pl.Buffered(1) unsupported on this jax version/backend:
        # fall back to default double-buffered weights (already in the budget).
        return build(False)(x, w1, b1r, w2, b2r)


def _reference(x, w1, b1, w2, b2):
    # Pure-JAX reference mirroring the PyTorch forward exactly.
    x_f = jnp.mean(x, axis=1)                         # (B, N)
    x_f = jax.nn.sigmoid(x_f @ w1.T + b1)             # Linear1 + sigmoid
    x_f = jax.nn.sigmoid(x_f @ w2.T + b2)             # Linear2 + sigmoid
    return x * x_f[:, None, :]                        # unsqueeze(-2) + mul


if __name__ == "__main__":
    B, C, N = 8, 4, 16   # batch, channels (reduced dim), n_nodes

    key = jax.random.PRNGKey(0)
    kx, kw1, kb1, kw2, kb2 = jax.random.split(key, 5)

    x = jax.random.normal(kx, (B, C, N), dtype=jnp.float32)

    # Deterministic PyTorch nn.Linear-style init (uniform bound 1/sqrt(N)).
    bound = 1.0 / (N ** 0.5)
    w1 = jax.random.uniform(kw1, (N, N), minval=-bound, maxval=bound, dtype=jnp.float32)
    b1 = jax.random.uniform(kb1, (N,),   minval=-bound, maxval=bound, dtype=jnp.float32)
    w2 = jax.random.uniform(kw2, (N, N), minval=-bound, maxval=bound, dtype=jnp.float32)
    b2 = jax.random.uniform(kb2, (N,),   minval=-bound, maxval=bound, dtype=jnp.float32)

    out = temporal_squeeze_excitation(x, w1, b1, w2, b2)
    out = jax.block_until_ready(out)

    ref = _reference(x, w1, b1, w2, b2)
    assert out.shape == (B, C, N)
    assert jnp.allclose(out, ref, atol=1e-5, rtol=1e-5), "mismatch vs reference"

    print("KERNEL_OK")
</pallas_src>

<mosaic_0001>
module attributes {stable_mosaic.version = 11 : i64} {
  func.func @_tse_kernel(%arg0: i32, %arg1: memref<4x4x16xf32, #tpu.memory_space<vmem>>, %arg2: memref<16x16xf32, #tpu.memory_space<vmem>>, %arg3: memref<1x16xf32, #tpu.memory_space<vmem>>, %arg4: memref<16x16xf32, #tpu.memory_space<vmem>>, %arg5: memref<1x16xf32, #tpu.memory_space<vmem>>, %arg6: memref<4x4x16xf32, #tpu.memory_space<vmem>>) attributes {dimension_semantics = [#tpu.dimension_semantics<parallel>], iteration_bounds = array<i64: 2>, scalar_prefetch = 0 : i64, scratch_operands = 0 : i64, tpu.core_type = #tpu.core_type<tc>, window_params = [{transform_indices = @transform_0, window_bounds = array<i64: 4, 4, 16>}, {pipeline_mode = #tpu.pipeline_mode<synchronous>, transform_indices = @transform_1, window_bounds = array<i64: 16, 16>}, {pipeline_mode = #tpu.pipeline_mode<synchronous>, transform_indices = @transform_2, window_bounds = array<i64: 1, 16>}, {pipeline_mode = #tpu.pipeline_mode<synchronous>, transform_indices = @transform_3, window_bounds = array<i64: 16, 16>}, {pipeline_mode = #tpu.pipeline_mode<synchronous>, transform_indices = @transform_4, window_bounds = array<i64: 1, 16>}, {transform_indices = @transform_5, window_bounds = array<i64: 4, 4, 16>}]} {
    %c0 = arith.constant 0 : index
    %c0_0 = arith.constant 0 : index
    %c0_1 = arith.constant 0 : index
    %0 = vector.load %arg1[%c0, %c0_0, %c0_1] : memref<4x4x16xf32, #tpu.memory_space<vmem>>, vector<4x4x16xf32>
    %cst = arith.constant dense<0.000000e+00> : vector<4x16xf32>
    %1 = vector.multi_reduction <add>, %0, %cst [1] : vector<4x4x16xf32> to vector<4x16xf32>
    %cst_2 = arith.constant 2.500000e-01 : f32
    %2 = vector.broadcast %cst_2 : f32 to vector<4x16xf32>
    %3 = arith.mulf %1, %2 : vector<4x16xf32>
    %c0_3 = arith.constant 0 : index
    %c0_4 = arith.constant 0 : index
    %4 = vector.load %arg2[%c0_3, %c0_4] : memref<16x16xf32, #tpu.memory_space<vmem>>, vector<16x16xf32>
    %cst_5 = arith.constant dense<0.000000e+00> : vector<4x16xf32>
    %5 = tpu.matmul %3, %4, %cst_5 {dimension_numbers = #tpu.dot_dimension_numbers<[1], [1], [0], [0], [0, 0, 1, 0], [], []>} : vector<4x16xf32>, vector<16x16xf32>, vector<4x16xf32> -> vector<4x16xf32>
    %c0_6 = arith.constant 0 : index
    %c0_7 = arith.constant 0 : index
    %6 = vector.load %arg3[%c0_6, %c0_7] : memref<1x16xf32, #tpu.memory_space<vmem>>, vector<1x16xf32>
    %7 = vector.broadcast %6 : vector<1x16xf32> to vector<4x16xf32>
    %8 = arith.addf %5, %7 : vector<4x16xf32>
    %9 = arith.negf %8 : vector<4x16xf32>
    %10 = math.exp %9 : vector<4x16xf32>
    %cst_8 = arith.constant 1.000000e+00 : f32
    %11 = vector.broadcast %cst_8 : f32 to vector<4x16xf32>
    %12 = arith.addf %11, %10 : vector<4x16xf32>
    %13 = arith.divf %11, %12 : vector<4x16xf32>
    %c0_9 = arith.constant 0 : index
    %c0_10 = arith.constant 0 : index
    %14 = vector.load %arg4[%c0_9, %c0_10] : memref<16x16xf32, #tpu.memory_space<vmem>>, vector<16x16xf32>
    %cst_11 = arith.constant dense<0.000000e+00> : vector<4x16xf32>
    %15 = tpu.matmul %13, %14, %cst_11 {dimension_numbers = #tpu.dot_dimension_numbers<[1], [1], [0], [0], [0, 0, 1, 0], [], []>} : vector<4x16xf32>, vector<16x16xf32>, vector<4x16xf32> -> vector<4x16xf32>
    %c0_12 = arith.constant 0 : index
    %c0_13 = arith.constant 0 : index
    %16 = vector.load %arg5[%c0_12, %c0_13] : memref<1x16xf32, #tpu.memory_space<vmem>>, vector<1x16xf32>
    %17 = vector.broadcast %16 : vector<1x16xf32> to vector<4x16xf32>
    %18 = arith.addf %15, %17 : vector<4x16xf32>
    %19 = arith.negf %18 : vector<4x16xf32>
    %20 = math.exp %19 : vector<4x16xf32>
    %cst_14 = arith.constant 1.000000e+00 : f32
    %21 = vector.broadcast %cst_14 : f32 to vector<4x16xf32>
    %22 = arith.addf %21, %20 : vector<4x16xf32>
    %23 = arith.divf %21, %22 : vector<4x16xf32>
    %c0_15 = arith.constant 0 : index
    %c0_16 = arith.constant 0 : index
    %c0_17 = arith.constant 0 : index
    %24 = vector.load %arg1[%c0_15, %c0_16, %c0_17] : memref<4x4x16xf32, #tpu.memory_space<vmem>>, vector<4x4x16xf32>
    %25 = vector.shape_cast %23 : vector<4x16xf32> to vector<4x1x16xf32>
    %26 = vector.broadcast %25 : vector<4x1x16xf32> to vector<4x4x16xf32>
    %27 = arith.mulf %24, %26 : vector<4x4x16xf32>
    %c0_18 = arith.constant 0 : index
    %c0_19 = arith.constant 0 : index
    %c0_20 = arith.constant 0 : index
    %28 = vector.load %arg6[%c0_18, %c0_19, %c0_20] : memref<4x4x16xf32, #tpu.memory_space<vmem>>, vector<4x4x16xf32>
    tpu.vector_store %arg6[%c0_18, %c0_19, %c0_20], %27 {strides = array<i32>} : memref<4x4x16xf32, #tpu.memory_space<vmem>>, vector<4x4x16xf32>,
    return
  }
  func.func @transform_0(%arg0: i32) -> (i32, i32, i32) {
    %c0_i32 = arith.constant 0 : i32
    %c0_i32_0 = arith.constant 0 : i32
    %c0_i32_1 = arith.constant 0 : i32
    return %arg0, %c0_i32, %c0_i32_0 : i32, i32, i32
  }
  func.func @transform_1(%arg0: i32) -> (i32, i32) {
    %c0_i32 = arith.constant 0 : i32
    %c0_i32_0 = arith.constant 0 : i32
    %c0_i32_1 = arith.constant 0 : i32
    return %c0_i32, %c0_i32_0 : i32, i32
  }
  func.func @transform_2(%arg0: i32) -> (i32, i32) {
    %c0_i32 = arith.constant 0 : i32
    %c0_i32_0 = arith.constant 0 : i32
    %c0_i32_1 = arith.constant 0 : i32
    return %c0_i32, %c0_i32_0 : i32, i32
  }
  func.func @transform_3(%arg0: i32) -> (i32, i32) {
    %c0_i32 = arith.constant 0 : i32
    %c0_i32_0 = arith.constant 0 : i32
    %c0_i32_1 = arith.constant 0 : i32
    return %c0_i32, %c0_i32_0 : i32, i32
  }
  func.func @transform_4(%arg0: i32) -> (i32, i32) {
    %c0_i32 = arith.constant 0 : i32
    %c0_i32_0 = arith.constant 0 : i32
    %c0_i32_1 = arith.constant 0 : i32
    return %c0_i32, %c0_i32_0 : i32, i32
  }
  func.func @transform_5(%arg0: i32) -> (i32, i32, i32) {
    %c0_i32 = arith.constant 0 : i32
    %c0_i32_0 = arith.constant 0 : i32
    %c0_i32_1 = arith.constant 0 : i32
    return %arg0, %c0_i32, %c0_i32_0 : i32, i32, i32
  }
}

module attributes {stable_mosaic.version = 11 : i64} {
  func.func @_tse_kernel(%arg0: i32, %arg1: memref<4x4x16xf32, #tpu.memory_space<vmem>>, %arg2: memref<16x16xf32, #tpu.memory_space<vmem>>, %arg3: memref<1x16xf32, #tpu.memory_space<vmem>>, %arg4: memref<16x16xf32, #tpu.memory_space<vmem>>, %arg5: memref<1x16xf32, #tpu.memory_space<vmem>>, %arg6: memref<4x4x16xf32, #tpu.memory_space<vmem>>) attributes {dimension_semantics = [#tpu.dimension_semantics<parallel>], iteration_bounds = array<i64: 2>, scalar_prefetch = 0 : i64, scratch_operands = 0 : i64, tpu.core_type = #tpu.core_type<tc>, window_params = [{transform_indices = @transform_0, window_bounds = array<i64: 4, 4, 16>}, {pipeline_mode = #tpu.pipeline_mode<synchronous>, transform_indices = @transform_1, window_bounds = array<i64: 16, 16>}, {pipeline_mode = #tpu.pipeline_mode<synchronous>, transform_indices = @transform_2, window_bounds = array<i64: 1, 16>}, {pipeline_mode = #tpu.pipeline_mode<synchronous>, transform_indices = @transform_3, window_bounds = array<i64: 16, 16>}, {pipeline_mode = #tpu.pipeline_mode<synchronous>, transform_indices = @transform_4, window_bounds = array<i64: 1, 16>}, {transform_indices = @transform_5, window_bounds = array<i64: 4, 4, 16>}]} {
    %c0 = arith.constant 0 : index
    %c0_0 = arith.constant 0 : index
    %c0_1 = arith.constant 0 : index
    %0 = vector.load %arg1[%c0, %c0_0, %c0_1] : memref<4x4x16xf32, #tpu.memory_space<vmem>>, vector<4x4x16xf32>
    %cst = arith.constant dense<0.000000e+00> : vector<4x16xf32>
    %1 = vector.multi_reduction <add>, %0, %cst [1] : vector<4x4x16xf32> to vector<4x16xf32>
    %cst_2 = arith.constant 2.500000e-01 : f32
    %2 = vector.broadcast %cst_2 : f32 to vector<4x16xf32>
    %3 = arith.mulf %1, %2 : vector<4x16xf32>
    %c0_3 = arith.constant 0 : index
    %c0_4 = arith.constant 0 : index
    %4 = vector.load %arg2[%c0_3, %c0_4] : memref<16x16xf32, #tpu.memory_space<vmem>>, vector<16x16xf32>
    %cst_5 = arith.constant dense<0.000000e+00> : vector<4x16xf32>
    %5 = tpu.matmul %3, %4, %cst_5 {dimension_numbers = #tpu.dot_dimension_numbers<[1], [1], [0], [0], [0, 0, 1, 0], [], []>} : vector<4x16xf32>, vector<16x16xf32>, vector<4x16xf32> -> vector<4x16xf32>
    %c0_6 = arith.constant 0 : index
    %c0_7 = arith.constant 0 : index
    %6 = vector.load %arg3[%c0_6, %c0_7] : memref<1x16xf32, #tpu.memory_space<vmem>>, vector<1x16xf32>
    %7 = vector.broadcast %6 : vector<1x16xf32> to vector<4x16xf32>
    %8 = arith.addf %5, %7 : vector<4x16xf32>
    %9 = arith.negf %8 : vector<4x16xf32>
    %10 = math.exp %9 : vector<4x16xf32>
    %cst_8 = arith.constant 1.000000e+00 : f32
    %11 = vector.broadcast %cst_8 : f32 to vector<4x16xf32>
    %12 = arith.addf %11, %10 : vector<4x16xf32>
    %13 = arith.divf %11, %12 : vector<4x16xf32>
    %c0_9 = arith.constant 0 : index
    %c0_10 = arith.constant 0 : index
    %14 = vector.load %arg4[%c0_9, %c0_10] : memref<16x16xf32, #tpu.memory_space<vmem>>, vector<16x16xf32>
    %cst_11 = arith.constant dense<0.000000e+00> : vector<4x16xf32>
    %15 = tpu.matmul %13, %14, %cst_11 {dimension_numbers = #tpu.dot_dimension_numbers<[1], [1], [0], [0], [0, 0, 1, 0], [], []>} : vector<4x16xf32>, vector<16x16xf32>, vector<4x16xf32> -> vector<4x16xf32>
    %c0_12 = arith.constant 0 : index
    %c0_13 = arith.constant 0 : index
    %16 = vector.load %arg5[%c0_12, %c0_13] : memref<1x16xf32, #tpu.memory_space<vmem>>, vector<1x16xf32>
    %17 = vector.broadcast %16 : vector<1x16xf32> to vector<4x16xf32>
    %18 = arith.addf %15, %17 : vector<4x16xf32>
    %19 = arith.negf %18 : vector<4x16xf32>
    %20 = math.exp %19 : vector<4x16xf32>
    %cst_14 = arith.constant 1.000000e+00 : f32
    %21 = vector.broadcast %cst_14 : f32 to vector<4x16xf32>
    %22 = arith.addf %21, %20 : vector<4x16xf32>
    %23 = arith.divf %21, %22 : vector<4x16xf32>
    %c0_15 = arith.constant 0 : index
    %c0_16 = arith.constant 0 : index
    %c0_17 = arith.constant 0 : index
    %24 = vector.load %arg1[%c0_15, %c0_16, %c0_17] : memref<4x4x16xf32, #tpu.memory_space<vmem>>, vector<4x4x16xf32>
    %25 = vector.shape_cast %23 : vector<4x16xf32> to vector<4x1x16xf32>
    %26 = vector.broadcast %25 : vector<4x1x16xf32> to vector<4x4x16xf32>
    %27 = arith.mulf %24, %26 : vector<4x4x16xf32>
    %c0_18 = arith.constant 0 : index
    %c0_19 = arith.constant 0 : index
    %c0_20 = arith.constant 0 : index
    %28 = vector.load %arg6[%c0_18, %c0_19, %c0_20] : memref<4x4x16xf32, #tpu.memory_space<vmem>>, vector<4x4x16xf32>
    tpu.vector_store %arg6[%c0_18, %c0_19, %c0_20], %27 {strides = array<i32>} : memref<4x4x16xf32, #tpu.memory_space<vmem>>, vector<4x4x16xf32>,
    return
  }
  func.func @transform_0(%arg0: i32) -> (i32, i32, i32) {
    %c0_i32 = arith.constant 0 : i32
    %c0_i32_0 = arith.constant 0 : i32
    %c0_i32_1 = arith.constant 0 : i32
    return %arg0, %c0_i32, %c0_i32_0 : i32, i32, i32
  }
  func.func @transform_1(%arg0: i32) -> (i32, i32) {
    %c0_i32 = arith.constant 0 : i32
    %c0_i32_0 = arith.constant 0 : i32
    %c0_i32_1 = arith.constant 0 : i32
    return %c0_i32, %c0_i32_0 : i32, i32
  }
  func.func @transform_2(%arg0: i32) -> (i32, i32) {
    %c0_i32 = arith.constant 0 : i32
    %c0_i32_0 = arith.constant 0 : i32
    %c0_i32_1 = arith.constant 0 : i32
    return %c0_i32, %c0_i32_0 : i32, i32
  }
  func.func @transform_3(%arg0: i32) -> (i32, i32) {
    %c0_i32 = arith.constant 0 : i32
    %c0_i32_0 = arith.constant 0 : i32
    %c0_i32_1 = arith.constant 0 : i32
    return %c0_i32, %c0_i32_0 : i32, i32
  }
  func.func @transform_4(%arg0: i32) -> (i32, i32) {
    %c0_i32 = arith.constant 0 : i32
    %c0_i32_0 = arith.constant 0 : i32
    %c0_i32_1 = arith.constant 0 : i32
    return %c0_i32, %c0_i32_0 : i32, i32
  }
  func.func @transform_5(%arg0: i32) -> (i32, i32, i32) {
    %c0_i32 = arith.constant 0 : i32
    %c0_i32_0 = arith.constant 0 : i32
    %c0_i32_1 = arith.constant 0 : i32
    return %arg0, %c0_i32, %c0_i32_0 : i32, i32, i32
  }
}

</mosaic_0001>

<llo_original>
// kernel: tpu_custom_call.1
$region0: #{tpu_custom_call.1}
  #allocation0 [shape = 'u32[]', space=smem, size = 0x4, offset = 0x4, fixed_abs, tag = 'smem constant byte address 0x4 - core index']
  #allocation1 [shape = 'u32[144,128]{1,0:T(1,128)}', space=vmem, size = 0x12000, scoped, tag = 'internal scratch']
  %s0 = inlined_call_operand.hbm [shape: f32[8,4,16], index: 0, kind: input, shape index: {}]
  %s1 = inlined_call_operand.hbm [shape: f32[16,16], index: 1, kind: input, shape index: {}]
  %s2 = inlined_call_operand.vmem [shape: f32[1,16], index: 2, kind: input, shape index: {}]
  %s3 = inlined_call_operand.hbm [shape: f32[16,16], index: 3, kind: input, shape index: {}]
  %s4 = inlined_call_operand.vmem [shape: f32[1,16], index: 4, kind: input, shape index: {}]
  %s5 = inlined_call_operand.hbm [shape: f32[8,4,16], index: 5, kind: output, shape index: {}]
  %s6 = sld [smem:[#allocation0]]
  $region65: #{tpu_custom_call.1} parent=0
    _
  %s8 = ssub.s32 1, %s6
  %s9 = scalar_select 0, %s8, %s6
  $region1: #{tpu_custom_call.1} parent=0
    #allocation2 [shape = 'u8[16384]{0}', space=vmem, size = 0x4000, scoped, tag = 'input window, operand 0']
    #allocation3 [shape = 's32[2]{0}', space=sflag, size = 0x8, scoped, tag = 'scoped memory for tpu_custom_call.1']
    #allocation4 [shape = 's32[2]{0}', space=sflag, size = 0x8, scoped, tag = 'scoped memory for tpu_custom_call.1']
    #allocation5 [shape = 'u8[8192]{0}', space=vmem, size = 0x2000, scoped, tag = 'input window, operand 1, single buffered']
    #allocation6 [shape = 's32[1]{0}', space=sflag, size = 0x4, scoped, tag = 'scoped memory for tpu_custom_call.1']
    #allocation7 [shape = 'u8[8192]{0}', space=vmem, size = 0x2000, scoped, tag = 'input window, operand 3, single buffered']
    #allocation8 [shape = 'u8[16384]{0}', space=vmem, size = 0x4000, scoped, tag = 'output window, operand 0']
    %10 = vsyncpa [#allocation3], 0
    %s11 = scalar_lea.sflag [#allocation3], 1
    %12 = vsyncpa %s11, 0
    %13 = vsyncpa [#allocation6], 0
    %14 = vsyncpa [#allocation4], 0
    %s15 = scalar_lea.sflag [#allocation4], 1
    %16 = vsyncpa %s15, 0
    loop: start=0, step=1, limit=4
    $region2: #{tpu_custom_call.1} parent=1 // loop_pre_header
      _
    $region3: #{tpu_custom_call.1} parent=1 // loop_header
      %s18 = sphi 0, %s22
      %p19 = scmp.ge.s32.totalorder %s18, 4
      %s28 = sphi 0, %s30
      %s31 = sphi 0, %s28
      %s32 = sphi 0, %s31
      %s48 = sphi 0, %s32
      %s52 = sphi 0, %s52
      %s54 = sphi 0, %s52
      %s55 = sphi 0, %s54
      %s69 = sphi 0, %s55
      %s73 = sphi 0, %s73
      %s75 = sphi 0, %s73
      %s76 = sphi 0, %s75
      %s90 = sphi 0, %s76
      %s94 = sphi 0, %s94
      %s96 = sphi 0, %s94
      %s97 = sphi 0, %s96
      %s111 = sphi 0, %s97
      %s115 = sphi 0, %s115
      %s117 = sphi 0, %s115
      %s118 = sphi 0, %s117
      %s132 = sphi 0, %s118
      %s138 = sphi 0, %s140
      %s141 = sphi 0, %s138
      %s142 = sphi 0, %s141
      %s158 = sphi 0, %s142
    $region4: #{tpu_custom_call.1} parent=1 // loop_header_branch
      %21 = sbr.rel (%p19) target = $region8
    $region5: #{tpu_custom_call.1} parent=1 // loop_body
      %s23 = ssub.s32 %s18, 1
      %s24 = ssub.s32 %s18, 2
      %s25 = sadd.s32 %s18, 1
      %s26 = ssub.s32 %s18, %s25
      %p27 = scmp.eq.s32.totalorder %s26, 0
      %s29 = sadd.s32 %s28, 1
      %s30 = scalar_select %p27, %s28, %s29
      %p33 = pneg %p27
      %p34 = scmp.eq.s32.totalorder %s18, 1
      %p35 = por %p33, %p34
      %p36 = scmp.ne.s32.totalorder %s28, %s31
      %p37 = scmp.eq.s32.totalorder %s18, 0
      %p38 = por %p36, %p37
      %p39 = scmp.ne.s32.totalorder %s28, %s31
      %p40 = scmp.eq.s32.totalorder %s23, 1
      %p41 = por %p39, %p40
      %p42 = scmp.ne.s32.totalorder %s31, %s32
      %p43 = scmp.eq.s32.totalorder %s23, 0
      %p44 = por %p42, %p43
      %p45 = scmp.ne.s32.totalorder %s31, %s32
      %p46 = scmp.eq.s32.totalorder %s24, 1
      %p47 = por %p45, %p46
      %p49 = scmp.ne.s32.totalorder %s32, %s48
      %p50 = scmp.eq.s32.totalorder %s24, 0
      %p51 = por %p49, %p50
      %s53 = sadd.s32 %s52, 1
      %p56 = scmp.eq.s32.totalorder %s18, 1
      %p57 = scmp.ne.s32.totalorder %s52, %s54
      %p58 = scmp.eq.s32.totalorder %s18, 0
      %p59 = por %p57, %p58
      %p60 = scmp.ne.s32.totalorder %s52, %s54
      %p61 = scmp.eq.s32.totalorder %s23, 1
      %p62 = por %p60, %p61
      %p63 = scmp.ne.s32.totalorder %s54, %s55
      %p64 = scmp.eq.s32.totalorder %s23, 0
      %p65 = por %p63, %p64
      %p66 = scmp.ne.s32.totalorder %s54, %s55
      %p67 = scmp.eq.s32.totalorder %s24, 1
      %p68 = por %p66, %p67
      %p70 = scmp.ne.s32.totalorder %s55, %s69
      %p71 = scmp.eq.s32.totalorder %s24, 0
      %p72 = por %p70, %p71
      %s74 = sadd.s32 %s73, 1
      %p77 = scmp.eq.s32.totalorder %s18, 1
      %p78 = scmp.ne.s32.totalorder %s73, %s75
      %p79 = scmp.eq.s32.totalorder %s18, 0
      %p80 = por %p78, %p79
      %p81 = scmp.ne.s32.totalorder %s73, %s75
      %p82 = scmp.eq.s32.totalorder %s23, 1
      %p83 = por %p81, %p82
      %p84 = scmp.ne.s32.totalorder %s75, %s76
      %p85 = scmp.eq.s32.totalorder %s23, 0
      %p86 = por %p84, %p85
      %p87 = scmp.ne.s32.totalorder %s75, %s76
      %p88 = scmp.eq.s32.totalorder %s24, 1
      %p89 = por %p87, %p88
      %p91 = scmp.ne.s32.totalorder %s76, %s90
      %p92 = scmp.eq.s32.totalorder %s24, 0
      %p93 = por %p91, %p92
      %s95 = sadd.s32 %s94, 1
      %p98 = scmp.eq.s32.totalorder %s18, 1
      %p99 = scmp.ne.s32.totalorder %s94, %s96
      %p100 = scmp.eq.s32.totalorder %s18, 0
      %p101 = por %p99, %p100
      %p102 = scmp.ne.s32.totalorder %s94, %s96
      %p103 = scmp.eq.s32.totalorder %s23, 1
      %p104 = por %p102, %p103
      %p105 = scmp.ne.s32.totalorder %s96, %s97
      %p106 = scmp.eq.s32.totalorder %s23, 0
      %p107 = por %p105, %p106
      %p108 = scmp.ne.s32.totalorder %s96, %s97
      %p109 = scmp.eq.s32.totalorder %s24, 1
      %p110 = por %p108, %p109
      %p112 = scmp.ne.s32.totalorder %s97, %s111
      %p113 = scmp.eq.s32.totalorder %s24, 0
      %p114 = por %p112, %p113
      %s116 = sadd.s32 %s115, 1
      %p119 = scmp.eq.s32.totalorder %s18, 1
      %p120 = scmp.ne.s32.totalorder %s115, %s117
      %p121 = scmp.eq.s32.totalorder %s18, 0
      %p122 = por %p120, %p121
      %p123 = scmp.ne.s32.totalorder %s115, %s117
      %p124 = scmp.eq.s32.totalorder %s23, 1
      %p125 = por %p123, %p124
      %p126 = scmp.ne.s32.totalorder %s117, %s118
      %p127 = scmp.eq.s32.totalorder %s23, 0
      %p128 = por %p126, %p127
      %p129 = scmp.ne.s32.totalorder %s117, %s118
      %p130 = scmp.eq.s32.totalorder %s24, 1
      %p131 = por %p129, %p130
      %p133 = scmp.ne.s32.totalorder %s118, %s132
      %p134 = scmp.eq.s32.totalorder %s24, 0
      %p135 = por %p133, %p134
      %s136 = ssub.s32 %s18, %s25
      %p137 = scmp.eq.s32.totalorder %s136, 0
      %s139 = sadd.s32 %s138, 1
      %s140 = scalar_select %p137, %s138, %s139
      %p143 = pneg %p137
      %p144 = scmp.eq.s32.totalorder %s18, 1
      %p145 = por %p143, %p144
      %p146 = scmp.ne.s32.totalorder %s138, %s141
      %p147 = scmp.eq.s32.totalorder %s18, 0
      %p148 = por %p146, %p147
      %p149 = scmp.ne.s32.totalorder %s138, %s141
      %p150 = scmp.eq.s32.totalorder %s23, 1
      %p151 = por %p149, %p150
      %p152 = scmp.ne.s32.totalorder %s141, %s142
      %p153 = scmp.eq.s32.totalorder %s23, 0
      %p154 = por %p152, %p153
      %p155 = scmp.ne.s32.totalorder %s141, %s142
      %p156 = scmp.eq.s32.totalorder %s24, 1
      %p157 = por %p155, %p156
      %p159 = scmp.ne.s32.totalorder %s142, %s158
      %p160 = scmp.eq.s32.totalorder %s24, 0
      %p161 = por %p159, %p160
      %p162 = scmp.le.s32.totalorder 1, %s18
      %p163 = scmp.lt.s32.totalorder %s18, 3
      %p164 = pnand %p162, %p163
      %p165 = pneg %p164
      // Predicated region
      $region9: #{tpu_custom_call.1} parent=5 // pred_check
        _
      $region10: #{tpu_custom_call.1} parent=5 // pred_check_branch
        %167 = sbr.rel (%p164) target = $region12
      $region11: #{tpu_custom_call.1} parent=5 // pred_region
        %s168 = ssub.s32 %s18, 1
        // Predicated region
        $region13: #{tpu_custom_call.1} parent=11 // pred_check
          %p169 = pneg %p65
        $region14: #{tpu_custom_call.1} parent=11 // pred_check_branch
          %171 = sbr.rel (%p169) target = $region16
        $region15: #{tpu_custom_call.1} parent=11 // pred_region
          %s173 = ssub.s32 256, 256
          %174 = vsyncadd [#allocation6], %s173
          %s175 = sshll.u32 [#allocation5], 4
          %s176 = int_to_ptr.vmem [resolvable:$true] %s175
          %181 = dma.hbm_to_vmem [thread:$0]  %s1, 256, %s176, [#allocation6], 128, 128, 8
        $region16: #{tpu_custom_call.1} parent=11 // pred_fallthru
          _
        // Predicated region
        $region17: #{tpu_custom_call.1} parent=11 // pred_check
          %p182 = pneg %p86
        $region18: #{tpu_custom_call.1} parent=11 // pred_check_branch
          %184 = sbr.rel (%p182) target = $region20
        $region19: #{tpu_custom_call.1} parent=11 // pred_region
          _
        $region20: #{tpu_custom_call.1} parent=11 // pred_fallthru
          _
        // Predicated region
        $region21: #{tpu_custom_call.1} parent=11 // pred_check
          %p185 = pneg %p107
        $region22: #{tpu_custom_call.1} parent=11 // pred_check_branch
          %187 = sbr.rel (%p185) target = $region24
        $region23: #{tpu_custom_call.1} parent=11 // pred_region
          %s189 = ssub.s32 256, 256
          %190 = vsyncadd [#allocation6], %s189
          %s191 = sshll.u32 [#allocation7], 4
          %s192 = int_to_ptr.vmem [resolvable:$true] %s191
          %197 = dma.hbm_to_vmem [thread:$0]  %s3, 256, %s192, [#allocation6], 128, 128, 8
        $region24: #{tpu_custom_call.1} parent=11 // pred_fallthru
          _
        // Predicated region
        $region25: #{tpu_custom_call.1} parent=11 // pred_check
          %p198 = pneg %p128
        $region26: #{tpu_custom_call.1} parent=11 // pred_check_branch
          %200 = sbr.rel (%p198) target = $region28
        $region27: #{tpu_custom_call.1} parent=11 // pred_region
          _
        $region28: #{tpu_custom_call.1} parent=11 // pred_fallthru
          _
      $region12: #{tpu_custom_call.1} parent=5 // pred_fallthru
        _
      %p201 = scmp.lt.s32.totalorder %s18, 2
      // Predicated region
      $region29: #{tpu_custom_call.1} parent=5 // pred_check
        %p202 = pneg %p201
      $region30: #{tpu_custom_call.1} parent=5 // pred_check_branch
        %204 = sbr.rel (%p202) target = $region32
      $region31: #{tpu_custom_call.1} parent=5 // pred_region
        // Predicated region
        $region33: #{tpu_custom_call.1} parent=31 // pred_check
          %p205 = pneg %p38
        $region34: #{tpu_custom_call.1} parent=31 // pred_check_branch
          %207 = sbr.rel (%p205) target = $region36
        $region35: #{tpu_custom_call.1} parent=31 // pred_region
          %s208 = sand.u32 %s28, 1
          %s209 = scalar_lea.sflag [#allocation3], %s208
          %s210 = sand.u32 %s28, 1
          %s211 = smul.addr %s210, 16
          %s212 = scalar_lea.vmem [#allocation2], %s211
          %s213 = smul.u32 4, %s18
          %s215 = ssub.s32 256, 256
          %216 = vsyncadd %s209, %s215
          %s217 = smul.addr %s213, 64
          %s218 = scalar_lea.hbm %s0, %s217
          %s219 = sshll.u32 %s212, 4
          %s220 = int_to_ptr.vmem [resolvable:$true] %s219
          %225 = dma.hbm_to_vmem [thread:$0]  %s218, 256, %s220, %s209, 64, 64, 4
        $region36: #{tpu_custom_call.1} parent=31 // pred_fallthru
          _
      $region32: #{tpu_custom_call.1} parent=5 // pred_fallthru
        _
      %p226 = scmp.le.s32.totalorder 1, %s18
      %p227 = scmp.lt.s32.totalorder %s18, 3
      %p228 = pnand %p226, %p227
      %p229 = pneg %p228
      // Predicated region
      $region37: #{tpu_custom_call.1} parent=5 // pred_check
        _
      $region38: #{tpu_custom_call.1} parent=5 // pred_check_branch
        %231 = sbr.rel (%p228) target = $region40
      $region39: #{tpu_custom_call.1} parent=5 // pred_region
        %s232 = ssub.s32 %s18, 1
        %s233 = sand.u32 %s31, 1
        %s234 = scalar_lea.sflag [#allocation3], %s233
        %s235 = sand.u32 %s31, 1
        %s236 = smul.addr %s235, 16
        %s237 = scalar_lea.vmem [#allocation2], %s236
        // Predicated region
        $region41: #{tpu_custom_call.1} parent=39 // pred_check
          %p238 = pneg %p44
        $region42: #{tpu_custom_call.1} parent=39 // pred_check_branch
          %240 = sbr.rel (%p238) target = $region44
        $region43: #{tpu_custom_call.1} parent=39 // pred_region
          %241 = dma.done %s234, 256
        $region44: #{tpu_custom_call.1} parent=39 // pred_fallthru
          _
        // Predicated region
        $region45: #{tpu_custom_call.1} parent=39 // pred_check
          %p242 = pneg %p65
        $region46: #{tpu_custom_call.1} parent=39 // pred_check_branch
          %244 = sbr.rel (%p242) target = $region48
        $region47: #{tpu_custom_call.1} parent=39 // pred_region
          %245 = dma.done [#allocation6], 256
        $region48: #{tpu_custom_call.1} parent=39 // pred_fallthru
          _
        // Predicated region
        $region49: #{tpu_custom_call.1} parent=39 // pred_check
          %p246 = pneg %p107
        $region50: #{tpu_custom_call.1} parent=39 // pred_check_branch
          %248 = sbr.rel (%p246) target = $region52
        $region51: #{tpu_custom_call.1} parent=39 // pred_region
          %249 = dma.done [#allocation6], 256
        $region52: #{tpu_custom_call.1} parent=39 // pred_fallthru
          _
        %s250 = sand.u32 %s31, 1
        %s251 = scalar_lea.sflag [#allocation3], %s250
        %s252 = sand.u32 %s31, 1
        %s253 = smul.addr %s252, 16
        %s254 = scalar_lea.vmem [#allocation2], %s253
        %p255 = pneg %p44
        %p256 = pneg %p41
        %p257 = pneg %p65
        %p258 = pneg %p62
        %p259 = pneg %p86
        %p260 = pneg %p83
        %p261 = pneg %p107
        %p262 = pneg %p104
        %p263 = pneg %p128
        %p264 = pneg %p125
        %p265 = pneg %p154
        %p266 = pneg %p151
        %s267 = sand.u32 %s141, 1
        %s268 = scalar_lea.sflag [#allocation4], %s267
        %s269 = sand.u32 %s141, 1
        %s270 = smul.addr %s269, 16
        %s271 = scalar_lea.vmem [#allocation8], %s270
        %s272 = smul.u32 4, %s23
        %s273 = smul.u32 4, %s23
        %v274 = vld [vmem:[%s237] sm:$0xf]
        %v275 = vld [vmem:[%s237 + $0x4] sm:$0xf]
        %v276 = vld [vmem:[%s237 + $0x8] sm:$0xf]
        %v277 = vld [vmem:[%s237 + $0xc] sm:$0xf]
        %vm278 = vcmask 125952
        %v279 = vsel %vm278, %v274, 0.0
        %v280 = vrot.slane %v279, 4
        %v281 = vadd.f32 %v279, %v280
        %v282 = vrot.slane %v281, 2
        %v283 = vadd.f32 %v281, %v282
        %v284 = vrot.slane %v283, 1
        %v285 = vadd.f32 %v283, %v284
        %v286 = vsel %vm278, %v275, 0.0
        %v287 = vrot.slane %v286, 4
        %v288 = vadd.f32 %v286, %v287
        %v289 = vrot.slane %v288, 2
        %v290 = vadd.f32 %v288, %v289
        %v291 = vrot.slane %v290, 1
        %v292 = vadd.f32 %v290, %v291
        %v293 = vsel %vm278, %v276, 0.0
        %v294 = vrot.slane %v293, 4
        %v295 = vadd.f32 %v293, %v294
        %v296 = vrot.slane %v295, 2
        %v297 = vadd.f32 %v295, %v296
        %v298 = vrot.slane %v297, 1
        %v299 = vadd.f32 %v297, %v298
        %v300 = vsel %vm278, %v277, 0.0
        %v301 = vrot.slane %v300, 4
        %v302 = vadd.f32 %v300, %v301
        %v303 = vrot.slane %v302, 2
        %v304 = vadd.f32 %v302, %v303
        %v305 = vrot.slane %v304, 1
        %v306 = vadd.f32 %v304, %v305
        %v307 = vmul.f32 %v285, 0.25
        %v308 = vmul.f32 %v292, 0.25
        %v309 = vmul.f32 %v299, 0.25
        %v310 = vmul.f32 %v306, 0.25
        %v311 = vld [vmem:[#allocation5] sm:$0xff]
        %v312 = vld [vmem:[#allocation5 + $0x8] sm:$0xff]
        %v313 = vld [vmem:[%s2] sm:$0x1]
        %v315 = vlaneseq
        %v316 = vshrl.u32 %v315, 7
        %v317 = vsub.s32 0, %v316
        %v318 = vrot.slane %v313, %v317
        %vm324 = vcmask 1041409
        %v325 = vsel %vm324, %v308, %v307
        %vm326 = vcmask 1042434
        %v327 = vsel %vm326, %v309, %v325
        %vm328 = vcmask 1043459
        %v329 = vsel %vm328, %v310, %v327
        %vm330 = vcmask 130048
        %v331 = vsel %vm330, %v329, 0
        %v334 = vsel %vm330, %v311, 0
        %v337 = vsel %vm330, %v312, 0
        %339 = vmatprep.subr.mxu0 0.0
        %340 = vmatpush1.xpose.msra.mxu0 %v334
        %341 = vmatprep.subr.mxu0 0.0
        %342 = vmatpush1.xpose.msra.mxu0 %v337
        %343 = vmatprep.subr.mxu0 0.0
        %344 = vmatpush1.xpose.msra.mxu0 0.0
        %345 = vmatprep.subr.mxu0 0.0
        %346 = vmatpush1.xpose.msra.mxu0 0.0
        %347 = vmatprep.subr.mxu0 0.0
        %348 = vmatpush1.xpose.msra.mxu0 0.0
        %349 = vmatprep.subr.mxu0 0.0
        %350 = vmatpush1.xpose.msra.mxu0 0.0
        %351 = vmatprep.subr.mxu0 0.0
        %352 = vmatpush1.xpose.msra.mxu0 0.0
        %353 = vmatprep.subr.mxu0 0.0
        %354 = vmatpush1.xpose.msra.mxu0 0.0
        %355 = vmatprep.subr.mxu0 0.0
        %356 = vmatpush1.xpose.msra.mxu0 0.0
        %357 = vmatprep.subr.mxu0 0.0
        %358 = vmatpush1.xpose.msra.mxu0 0.0
        %359 = vmatprep.subr.mxu0 0.0
        %360 = vmatpush1.xpose.msra.mxu0 0.0
        %361 = vmatprep.subr.mxu0 0.0
        %362 = vmatpush1.xpose.msra.mxu0 0.0
        %363 = vmatprep.subr.mxu0 0.0
        %364 = vmatpush1.xpose.msra.mxu0 0.0
        %365 = vmatprep.subr.mxu0 0.0
        %366 = vmatpush1.xpose.msra.mxu0 0.0
        %367 = vmatprep.subr.mxu0 0.0
        %368 = vmatpush1.xpose.msra.mxu0 0.0
        %369 = vmatprep.subr.mxu0 0.0
        %370 = vmatpush1.xpose.msra.mxu0 0.0
        %371 = vmatprep.subr.mxu0 0.0
        %372 = vmatpush1.xpose.msra.mxu0 0.0
        %373 = vmatprep.subr.mxu0 0.0
        %374 = vmatpush1.xpose.msra.mxu0 0.0
        %375 = vmatprep.subr.mxu0 0.0
        %376 = vmatpush1.xpose.msra.mxu0 0.0
        %377 = vmatprep.subr.mxu0 0.0
        %378 = vmatpush1.xpose.msra.mxu0 0.0
        %379 = vmatprep.subr.mxu0 0.0
        %380 = vmatpush1.xpose.msra.mxu0 0.0
        %381 = vmatprep.subr.mxu0 0.0
        %382 = vmatpush1.xpose.msra.mxu0 0.0
        %383 = vmatprep.subr.mxu0 0.0
        %384 = vmatpush1.xpose.msra.mxu0 0.0
        %385 = vmatprep.subr.mxu0 0.0
        %386 = vmatpush1.xpose.msra.mxu0 0.0
        %387 = vmatprep.subr.mxu0 0.0
        %388 = vmatpush1.xpose.msra.mxu0 0.0
        %389 = vmatprep.subr.mxu0 0.0
        %390 = vmatpush1.xpose.msra.mxu0 0.0
        %391 = vmatprep.subr.mxu0 0.0
        %392 = vmatpush1.xpose.msra.mxu0 0.0
        %393 = vmatprep.subr.mxu0 0.0
        %394 = vmatpush1.xpose.msra.mxu0 0.0
        %395 = vmatprep.subr.mxu0 0.0
        %396 = vmatpush1.xpose.msra.mxu0 0.0
        %397 = vmatprep.subr.mxu0 0.0
        %398 = vmatpush1.xpose.msra.mxu0 0.0
        %399 = vmatprep.subr.mxu0 0.0
        %400 = vmatpush1.xpose.msra.mxu0 0.0
        %401 = vmatprep.subr.mxu0 0.0
        %402 = vmatpush1.xpose.msra.mxu0 0.0
        %403 = vmatprep.mubr.f32.mxu0 0.0
        %404 = vmatmul.mubr.f32.gmra.mrb[0].mxu0 %v331
        %v405 = vpop.f32.mrb[0].mxu0
        %v406 = vadd.f32 %v318, %v405
        %v407 = vpop.f32.mrb[0].mxu0
        %408 = vdwg.mxu0
        %v409 = vxor.u32 %v406, 2147483648
        %v410 = vmul.f32 %v409, 1.442695
        %v411 = vpow.pop %v410
        %v412 = vadd.f32 %v411, 1.0
        %v413 = vrcp.pop %v412
        %v414 = vmul.f32 1.0, %v413
        %v415 = vld [vmem:[#allocation7] sm:$0xff]
        %v416 = vld [vmem:[#allocation7 + $0x8] sm:$0xff]
        %v417 = vld [vmem:[%s4] sm:$0x1]
        %v419 = vlaneseq
        %v420 = vshrl.u32 %v419, 7
        %v421 = vsub.s32 0, %v420
        %v422 = vrot.slane %v417, %v421
        %v425 = vsel %vm330, %v414, 0
        %v428 = vsel %vm330, %v415, 0
        %v431 = vsel %vm330, %v416, 0
        %433 = vmatprep.subr.mxu0 0.0
        %434 = vmatpush1.xpose.msra.mxu0 %v428
        %435 = vmatprep.subr.mxu0 0.0
        %436 = vmatpush1.xpose.msra.mxu0 %v431
        %437 = vmatprep.subr.mxu0 0.0
        %438 = vmatpush1.xpose.msra.mxu0 0.0
        %439 = vmatprep.subr.mxu0 0.0
        %440 = vmatpush1.xpose.msra.mxu0 0.0
        %441 = vmatprep.subr.mxu0 0.0
        %442 = vmatpush1.xpose.msra.mxu0 0.0
        %443 = vmatprep.subr.mxu0 0.0
        %444 = vmatpush1.xpose.msra.mxu0 0.0
        %445 = vmatprep.subr.mxu0 0.0
        %446 = vmatpush1.xpose.msra.mxu0 0.0
        %447 = vmatprep.subr.mxu0 0.0
        %448 = vmatpush1.xpose.msra.mxu0 0.0
        %449 = vmatprep.subr.mxu0 0.0
        %450 = vmatpush1.xpose.msra.mxu0 0.0
        %451 = vmatprep.subr.mxu0 0.0
        %452 = vmatpush1.xpose.msra.mxu0 0.0
        %453 = vmatprep.subr.mxu0 0.0
        %454 = vmatpush1.xpose.msra.mxu0 0.0
        %455 = vmatprep.subr.mxu0 0.0
        %456 = vmatpush1.xpose.msra.mxu0 0.0
        %457 = vmatprep.subr.mxu0 0.0
        %458 = vmatpush1.xpose.msra.mxu0 0.0
        %459 = vmatprep.subr.mxu0 0.0
        %460 = vmatpush1.xpose.msra.mxu0 0.0
        %461 = vmatprep.subr.mxu0 0.0
        %462 = vmatpush1.xpose.msra.mxu0 0.0
        %463 = vmatprep.subr.mxu0 0.0
        %464 = vmatpush1.xpose.msra.mxu0 0.0
        %465 = vmatprep.subr.mxu0 0.0
        %466 = vmatpush1.xpose.msra.mxu0 0.0
        %467 = vmatprep.subr.mxu0 0.0
        %468 = vmatpush1.xpose.msra.mxu0 0.0
        %469 = vmatprep.subr.mxu0 0.0
        %470 = vmatpush1.xpose.msra.mxu0 0.0
        %471 = vmatprep.subr.mxu0 0.0
        %472 = vmatpush1.xpose.msra.mxu0 0.0
        %473 = vmatprep.subr.mxu0 0.0
        %474 = vmatpush1.xpose.msra.mxu0 0.0
        %475 = vmatprep.subr.mxu0 0.0
        %476 = vmatpush1.xpose.msra.mxu0 0.0
        %477 = vmatprep.subr.mxu0 0.0
        %478 = vmatpush1.xpose.msra.mxu0 0.0
        %479 = vmatprep.subr.mxu0 0.0
        %480 = vmatpush1.xpose.msra.mxu0 0.0
        %481 = vmatprep.subr.mxu0 0.0
        %482 = vmatpush1.xpose.msra.mxu0 0.0
        %483 = vmatprep.subr.mxu0 0.0
        %484 = vmatpush1.xpose.msra.mxu0 0.0
        %485 = vmatprep.subr.mxu0 0.0
        %486 = vmatpush1.xpose.msra.mxu0 0.0
        %487 = vmatprep.subr.mxu0 0.0
        %488 = vmatpush1.xpose.msra.mxu0 0.0
        %489 = vmatprep.subr.mxu0 0.0
        %490 = vmatpush1.xpose.msra.mxu0 0.0
        %491 = vmatprep.subr.mxu0 0.0
        %492 = vmatpush1.xpose.msra.mxu0 0.0
        %493 = vmatprep.subr.mxu0 0.0
        %494 = vmatpush1.xpose.msra.mxu0 0.0
        %495 = vmatprep.subr.mxu0 0.0
        %496 = vmatpush1.xpose.msra.mxu0 0.0
        %497 = vmatprep.mubr.f32.mxu0 0.0
        %498 = vmatmul.mubr.f32.gmra.mrb[0].mxu0 %v425
        %v499 = vpop.f32.mrb[0].mxu0
        %v500 = vadd.f32 %v422, %v499
        %v501 = vpop.f32.mrb[0].mxu0
        %502 = vdwg.mxu0
        %v503 = vxor.u32 %v500, 2147483648
        %v504 = vmul.f32 %v503, 1.442695
        %v505 = vpow.pop %v504
        %v506 = vadd.f32 %v505, 1.0
        %v507 = vrcp.pop %v506
        %v508 = vmul.f32 1.0, %v507
        %v511 = vunpack.c.l.s4 1966171168
        %v512 = vunpack.c.0.s8 %v511
        %v513 = vlaneseq
        %v514 = vshrl.u32 %v513, 7
        %v515 = vsub.s32 %v512, %v514
        %v516 = vrot.slane %v508, %v515
        %v517 = vcombine.high %v516, %v516
        %v519 = vunpack.c.l.s4 1966171168
        %v520 = vunpack.c.0.s8 %v519
        %v521 = vlaneseq
        %v522 = vshrl.u32 %v521, 7
        %v523 = vsub.s32 %v520, %v522
        %v524 = vrot.slane %v516, %v523
        %v526 = vunpack.c.l.s4 1966171168
        %v527 = vunpack.c.0.s8 %v526
        %v528 = vlaneseq
        %v529 = vshrl.u32 %v528, 7
        %v530 = vsub.s32 %v527, %v529
        %v531 = vrot.slane %v517, %v530
        %v532 = vcombine.high %v524, %v524
        %v533 = vcombine.high %v531, %v531
        %v534 = vlaneseq
        %v535 = vshrl.u32 %v534, 7
        %v536 = vsub.s32 0, %v535
        %v537 = vrot.slane %v524, %v536
        %v538 = vlaneseq
        %v539 = vshrl.u32 %v538, 7
        %v540 = vsub.s32 0, %v539
        %v541 = vrot.slane %v531, %v540
        %v542 = vlaneseq
        %v543 = vshrl.u32 %v542, 7
        %v544 = vsub.s32 0, %v543
        %v545 = vrot.slane %v532, %v544
        %v546 = vlaneseq
        %v547 = vshrl.u32 %v546, 7
        %v548 = vsub.s32 0, %v547
        %v549 = vrot.slane %v533, %v548
        %v554 = vmul.f32 %v274, %v537
        %v555 = vmul.f32 %v275, %v541
        %v556 = vmul.f32 %v276, %v545
        %v557 = vmul.f32 %v277, %v549
        %558 = vst.msk [vmem:[%s271] sm:$0xf] %vm278, %v554
        %559 = vst.msk [vmem:[%s271 + $0x4] sm:$0xf] %vm278, %v555
        %560 = vst.msk [vmem:[%s271 + $0x8] sm:$0xf] %vm278, %v556
        %561 = vst.msk [vmem:[%s271 + $0xc] sm:$0xf] %vm278, %v557
        %s562 = sand.u32 %s141, 1
        %s563 = scalar_lea.sflag [#allocation4], %s562
        %s564 = sand.u32 %s141, 1
        %s565 = smul.addr %s564, 16
        %s566 = scalar_lea.vmem [#allocation8], %s565
        // Predicated region
        $region53: #{tpu_custom_call.1} parent=39 // pred_check
          %p567 = pneg %p151
        $region54: #{tpu_custom_call.1} parent=39 // pred_check_branch
          %569 = sbr.rel (%p567) target = $region56
        $region55: #{tpu_custom_call.1} parent=39 // pred_region
          %s570 = smul.u32 4, %s23
          %s572 = ssub.s32 256, 256
          %573 = vsyncadd %s563, %s572
          %s574 = smul.addr %s570, 64
          %s575 = scalar_lea.hbm %s5, %s574
          %s576 = sshll.u32 %s566, 4
          %s577 = int_to_ptr.vmem [resolvable:$true] %s576
          %582 = dma.vmem_to_hbm [thread:$0]  %s577, 256, %s575, %s563, 64, 64, 4
        $region56: #{tpu_custom_call.1} parent=39 // pred_fallthru
          _
      $region40: #{tpu_custom_call.1} parent=5 // pred_fallthru
        _
      %p583 = scmp.le.s32.totalorder 2, %s18
      // Predicated region
      $region57: #{tpu_custom_call.1} parent=5 // pred_check
        %p584 = pneg %p583
      $region58: #{tpu_custom_call.1} parent=5 // pred_check_branch
        %586 = sbr.rel (%p584) target = $region60
      $region59: #{tpu_custom_call.1} parent=5 // pred_region
        %s587 = ssub.s32 %s18, 2
        // Predicated region
        $region61: #{tpu_custom_call.1} parent=59 // pred_check
          %p588 = pneg %p157
        $region62: #{tpu_custom_call.1} parent=59 // pred_check_branch
          %590 = sbr.rel (%p588) target = $region64
        $region63: #{tpu_custom_call.1} parent=59 // pred_region
          %s591 = sand.u32 %s142, 1
          %s592 = scalar_lea.sflag [#allocation4], %s591
          %s593 = sand.u32 %s142, 1
          %s594 = smul.addr %s593, 16
          %s595 = scalar_lea.vmem [#allocation8], %s594
          %596 = dma.done %s592, 256
        $region64: #{tpu_custom_call.1} parent=59 // pred_fallthru
          _
      $region60: #{tpu_custom_call.1} parent=5 // pred_fallthru
        _
    $region6: #{tpu_custom_call.1} parent=1 // loop_footer
      %s22 = sadd.s32 1, %s18
    $region7: #{tpu_custom_call.1} parent=1 // loop_footer_branch
      %17 = sbr.rel target = $region3
    $region8: #{tpu_custom_call.1} parent=1 // loop_exit
      _
    %597 = vsyncpa [#allocation3], 1
    %s598 = scalar_lea.sflag [#allocation3], 1
    %599 = vsyncpa %s598, 1
    %600 = vsyncpa [#allocation6], 1
    %601 = vsyncpa [#allocation4], 1
    %s602 = scalar_lea.sflag [#allocation4], 1
    %603 = vsyncpa %s602, 1

// kernel: tpu_custom_call.1
$region0: #{tpu_custom_call.1}
  #allocation0 [shape = 'u32[]', space=smem, size = 0x4, offset = 0x4, fixed_abs, tag = 'smem constant byte address 0x4 - core index']
  #allocation1 [shape = 'u32[144,128]{1,0:T(1,128)}', space=vmem, size = 0x12000, scoped, tag = 'internal scratch']
  %s0 = inlined_call_operand.hbm [shape: f32[8,4,16], index: 0, kind: input, shape index: {}]
  %s1 = inlined_call_operand.hbm [shape: f32[16,16], index: 1, kind: input, shape index: {}]
  %s2 = inlined_call_operand.vmem [shape: f32[1,16], index: 2, kind: input, shape index: {}]
  %s3 = inlined_call_operand.hbm [shape: f32[16,16], index: 3, kind: input, shape index: {}]
  %s4 = inlined_call_operand.vmem [shape: f32[1,16], index: 4, kind: input, shape index: {}]
  %s5 = inlined_call_operand.hbm [shape: f32[8,4,16], index: 5, kind: output, shape index: {}]
  %s6 = sld [smem:[#allocation0]]
  $region65: #{tpu_custom_call.1} parent=0
    _
  %s8 = ssub.s32 1, %s6
  %s9 = scalar_select 0, %s8, %s6
  $region1: #{tpu_custom_call.1} parent=0
    #allocation2 [shape = 'u8[16384]{0}', space=vmem, size = 0x4000, scoped, tag = 'input window, operand 0']
    #allocation3 [shape = 's32[2]{0}', space=sflag, size = 0x8, scoped, tag = 'scoped memory for tpu_custom_call.1']
    #allocation4 [shape = 's32[2]{0}', space=sflag, size = 0x8, scoped, tag = 'scoped memory for tpu_custom_call.1']
    #allocation5 [shape = 'u8[8192]{0}', space=vmem, size = 0x2000, scoped, tag = 'input window, operand 1, single buffered']
    #allocation6 [shape = 's32[1]{0}', space=sflag, size = 0x4, scoped, tag = 'scoped memory for tpu_custom_call.1']
    #allocation7 [shape = 'u8[8192]{0}', space=vmem, size = 0x2000, scoped, tag = 'input window, operand 3, single buffered']
    #allocation8 [shape = 'u8[16384]{0}', space=vmem, size = 0x4000, scoped, tag = 'output window, operand 0']
    %10 = vsyncpa [#allocation3], 0
    %s11 = scalar_lea.sflag [#allocation3], 1
    %12 = vsyncpa %s11, 0
    %13 = vsyncpa [#allocation6], 0
    %14 = vsyncpa [#allocation4], 0
    %s15 = scalar_lea.sflag [#allocation4], 1
    %16 = vsyncpa %s15, 0
    loop: start=0, step=1, limit=4
    $region2: #{tpu_custom_call.1} parent=1 // loop_pre_header
      _
    $region3: #{tpu_custom_call.1} parent=1 // loop_header
      %s18 = sphi 0, %s22
      %p19 = scmp.ge.s32.totalorder %s18, 4
      %s28 = sphi 0, %s30
      %s31 = sphi 0, %s28
      %s32 = sphi 0, %s31
      %s48 = sphi 0, %s32
      %s52 = sphi 0, %s52
      %s54 = sphi 0, %s52
      %s55 = sphi 0, %s54
      %s69 = sphi 0, %s55
      %s73 = sphi 0, %s73
      %s75 = sphi 0, %s73
      %s76 = sphi 0, %s75
      %s90 = sphi 0, %s76
      %s94 = sphi 0, %s94
      %s96 = sphi 0, %s94
      %s97 = sphi 0, %s96
      %s111 = sphi 0, %s97
      %s115 = sphi 0, %s115
      %s117 = sphi 0, %s115
      %s118 = sphi 0, %s117
      %s132 = sphi 0, %s118
      %s138 = sphi 0, %s140
      %s141 = sphi 0, %s138
      %s142 = sphi 0, %s141
      %s158 = sphi 0, %s142
    $region4: #{tpu_custom_call.1} parent=1 // loop_header_branch
      %21 = sbr.rel (%p19) target = $region8
    $region5: #{tpu_custom_call.1} parent=1 // loop_body
      %s23 = ssub.s32 %s18, 1
      %s24 = ssub.s32 %s18, 2
      %s25 = sadd.s32 %s18, 1
      %s26 = ssub.s32 %s18, %s25
      %p27 = scmp.eq.s32.totalorder %s26, 0
      %s29 = sadd.s32 %s28, 1
      %s30 = scalar_select %p27, %s28, %s29
      %p33 = pneg %p27
      %p34 = scmp.eq.s32.totalorder %s18, 1
      %p35 = por %p33, %p34
      %p36 = scmp.ne.s32.totalorder %s28, %s31
      %p37 = scmp.eq.s32.totalorder %s18, 0
      %p38 = por %p36, %p37
      %p39 = scmp.ne.s32.totalorder %s28, %s31
      %p40 = scmp.eq.s32.totalorder %s23, 1
      %p41 = por %p39, %p40
      %p42 = scmp.ne.s32.totalorder %s31, %s32
      %p43 = scmp.eq.s32.totalorder %s23, 0
      %p44 = por %p42, %p43
      %p45 = scmp.ne.s32.totalorder %s31, %s32
      %p46 = scmp.eq.s32.totalorder %s24, 1
      %p47 = por %p45, %p46
      %p49 = scmp.ne.s32.totalorder %s32, %s48
      %p50 = scmp.eq.s32.totalorder %s24, 0
      %p51 = por %p49, %p50
      %s53 = sadd.s32 %s52, 1
      %p56 = scmp.eq.s32.totalorder %s18, 1
      %p57 = scmp.ne.s32.totalorder %s52, %s54
      %p58 = scmp.eq.s32.totalorder %s18, 0
      %p59 = por %p57, %p58
      %p60 = scmp.ne.s32.totalorder %s52, %s54
      %p61 = scmp.eq.s32.totalorder %s23, 1
      %p62 = por %p60, %p61
      %p63 = scmp.ne.s32.totalorder %s54, %s55
      %p64 = scmp.eq.s32.totalorder %s23, 0
      %p65 = por %p63, %p64
      %p66 = scmp.ne.s32.totalorder %s54, %s55
      %p67 = scmp.eq.s32.totalorder %s24, 1
      %p68 = por %p66, %p67
      %p70 = scmp.ne.s32.totalorder %s55, %s69
      %p71 = scmp.eq.s32.totalorder %s24, 0
      %p72 = por %p70, %p71
      %s74 = sadd.s32 %s73, 1
      %p77 = scmp.eq.s32.totalorder %s18, 1
      %p78 = scmp.ne.s32.totalorder %s73, %s75
      %p79 = scmp.eq.s32.totalorder %s18, 0
      %p80 = por %p78, %p79
      %p81 = scmp.ne.s32.totalorder %s73, %s75
      %p82 = scmp.eq.s32.totalorder %s23, 1
      %p83 = por %p81, %p82
      %p84 = scmp.ne.s32.totalorder %s75, %s76
      %p85 = scmp.eq.s32.totalorder %s23, 0
      %p86 = por %p84, %p85
      %p87 = scmp.ne.s32.totalorder %s75, %s76
      %p88 = scmp.eq.s32.totalorder %s24, 1
      %p89 = por %p87, %p88
      %p91 = scmp.ne.s32.totalorder %s76, %s90
      %p92 = scmp.eq.s32.totalorder %s24, 0
      %p93 = por %p91, %p92
      %s95 = sadd.s32 %s94, 1
      %p98 = scmp.eq.s32.totalorder %s18, 1
      %p99 = scmp.ne.s32.totalorder %s94, %s96
      %p100 = scmp.eq.s32.totalorder %s18, 0
      %p101 = por %p99, %p100
      %p102 = scmp.ne.s32.totalorder %s94, %s96
      %p103 = scmp.eq.s32.totalorder %s23, 1
      %p104 = por %p102, %p103
      %p105 = scmp.ne.s32.totalorder %s96, %s97
      %p106 = scmp.eq.s32.totalorder %s23, 0
      %p107 = por %p105, %p106
      %p108 = scmp.ne.s32.totalorder %s96, %s97
      %p109 = scmp.eq.s32.totalorder %s24, 1
      %p110 = por %p108, %p109
      %p112 = scmp.ne.s32.totalorder %s97, %s111
      %p113 = scmp.eq.s32.totalorder %s24, 0
      %p114 = por %p112, %p113
      %s116 = sadd.s32 %s115, 1
      %p119 = scmp.eq.s32.totalorder %s18, 1
      %p120 = scmp.ne.s32.totalorder %s115, %s117
      %p121 = scmp.eq.s32.totalorder %s18, 0
      %p122 = por %p120, %p121
      %p123 = scmp.ne.s32.totalorder %s115, %s117
      %p124 = scmp.eq.s32.totalorder %s23, 1
      %p125 = por %p123, %p124
      %p126 = scmp.ne.s32.totalorder %s117, %s118
      %p127 = scmp.eq.s32.totalorder %s23, 0
      %p128 = por %p126, %p127
      %p129 = scmp.ne.s32.totalorder %s117, %s118
      %p130 = scmp.eq.s32.totalorder %s24, 1
      %p131 = por %p129, %p130
      %p133 = scmp.ne.s32.totalorder %s118, %s132
      %p134 = scmp.eq.s32.totalorder %s24, 0
      %p135 = por %p133, %p134
      %s136 = ssub.s32 %s18, %s25
      %p137 = scmp.eq.s32.totalorder %s136, 0
      %s139 = sadd.s32 %s138, 1
      %s140 = scalar_select %p137, %s138, %s139
      %p143 = pneg %p137
      %p144 = scmp.eq.s32.totalorder %s18, 1
      %p145 = por %p143, %p144
      %p146 = scmp.ne.s32.totalorder %s138, %s141
      %p147 = scmp.eq.s32.totalorder %s18, 0
      %p148 = por %p146, %p147
      %p149 = scmp.ne.s32.totalorder %s138, %s141
      %p150 = scmp.eq.s32.totalorder %s23, 1
      %p151 = por %p149, %p150
      %p152 = scmp.ne.s32.totalorder %s141, %s142
      %p153 = scmp.eq.s32.totalorder %s23, 0
      %p154 = por %p152, %p153
      %p155 = scmp.ne.s32.totalorder %s141, %s142
      %p156 = scmp.eq.s32.totalorder %s24, 1
      %p157 = por %p155, %p156
      %p159 = scmp.ne.s32.totalorder %s142, %s158
      %p160 = scmp.eq.s32.totalorder %s24, 0
      %p161 = por %p159, %p160
      %p162 = scmp.le.s32.totalorder 1, %s18
      %p163 = scmp.lt.s32.totalorder %s18, 3
      %p164 = pnand %p162, %p163
      %p165 = pneg %p164
      // Predicated region
      $region9: #{tpu_custom_call.1} parent=5 // pred_check
        _
      $region10: #{tpu_custom_call.1} parent=5 // pred_check_branch
        %167 = sbr.rel (%p164) target = $region12
      $region11: #{tpu_custom_call.1} parent=5 // pred_region
        %s168 = ssub.s32 %s18, 1
        // Predicated region
        $region13: #{tpu_custom_call.1} parent=11 // pred_check
          %p169 = pneg %p65
        $region14: #{tpu_custom_call.1} parent=11 // pred_check_branch
          %171 = sbr.rel (%p169) target = $region16
        $region15: #{tpu_custom_call.1} parent=11 // pred_region
          %s173 = ssub.s32 256, 256
          %174 = vsyncadd [#allocation6], %s173
          %s175 = sshll.u32 [#allocation5], 4
          %s176 = int_to_ptr.vmem [resolvable:$true] %s175
          %181 = dma.hbm_to_vmem [thread:$0]  %s1, 256, %s176, [#allocation6], 128, 128, 8
        $region16: #{tpu_custom_call.1} parent=11 // pred_fallthru
          _
        // Predicated region
        $region17: #{tpu_custom_call.1} parent=11 // pred_check
          %p182 = pneg %p86
        $region18: #{tpu_custom_call.1} parent=11 // pred_check_branch
          %184 = sbr.rel (%p182) target = $region20
        $region19: #{tpu_custom_call.1} parent=11 // pred_region
          _
        $region20: #{tpu_custom_call.1} parent=11 // pred_fallthru
          _
        // Predicated region
        $region21: #{tpu_custom_call.1} parent=11 // pred_check
          %p185 = pneg %p107
        $region22: #{tpu_custom_call.1} parent=11 // pred_check_branch
          %187 = sbr.rel (%p185) target = $region24
        $region23: #{tpu_custom_call.1} parent=11 // pred_region
          %s189 = ssub.s32 256, 256
          %190 = vsyncadd [#allocation6], %s189
          %s191 = sshll.u32 [#allocation7], 4
          %s192 = int_to_ptr.vmem [resolvable:$true] %s191
          %197 = dma.hbm_to_vmem [thread:$0]  %s3, 256, %s192, [#allocation6], 128, 128, 8
        $region24: #{tpu_custom_call.1} parent=11 // pred_fallthru
          _
        // Predicated region
        $region25: #{tpu_custom_call.1} parent=11 // pred_check
          %p198 = pneg %p128
        $region26: #{tpu_custom_call.1} parent=11 // pred_check_branch
          %200 = sbr.rel (%p198) target = $region28
        $region27: #{tpu_custom_call.1} parent=11 // pred_region
          _
        $region28: #{tpu_custom_call.1} parent=11 // pred_fallthru
          _
      $region12: #{tpu_custom_call.1} parent=5 // pred_fallthru
        _
      %p201 = scmp.lt.s32.totalorder %s18, 2
      // Predicated region
      $region29: #{tpu_custom_call.1} parent=5 // pred_check
        %p202 = pneg %p201
      $region30: #{tpu_custom_call.1} parent=5 // pred_check_branch
        %204 = sbr.rel (%p202) target = $region32
      $region31: #{tpu_custom_call.1} parent=5 // pred_region
        // Predicated region
        $region33: #{tpu_custom_call.1} parent=31 // pred_check
          %p205 = pneg %p38
        $region34: #{tpu_custom_call.1} parent=31 // pred_check_branch
          %207 = sbr.rel (%p205) target = $region36
        $region35: #{tpu_custom_call.1} parent=31 // pred_region
          %s208 = sand.u32 %s28, 1
          %s209 = scalar_lea.sflag [#allocation3], %s208
          %s210 = sand.u32 %s28, 1
          %s211 = smul.addr %s210, 16
          %s212 = scalar_lea.vmem [#allocation2], %s211
          %s213 = smul.u32 4, %s18
          %s215 = ssub.s32 256, 256
          %216 = vsyncadd %s209, %s215
          %s217 = smul.addr %s213, 64
          %s218 = scalar_lea.hbm %s0, %s217
          %s219 = sshll.u32 %s212, 4
          %s220 = int_to_ptr.vmem [resolvable:$true] %s219
          %225 = dma.hbm_to_vmem [thread:$0]  %s218, 256, %s220, %s209, 64, 64, 4
        $region36: #{tpu_custom_call.1} parent=31 // pred_fallthru
          _
      $region32: #{tpu_custom_call.1} parent=5 // pred_fallthru
        _
      %p226 = scmp.le.s32.totalorder 1, %s18
      %p227 = scmp.lt.s32.totalorder %s18, 3
      %p228 = pnand %p226, %p227
      %p229 = pneg %p228
      // Predicated region
      $region37: #{tpu_custom_call.1} parent=5 // pred_check
        _
      $region38: #{tpu_custom_call.1} parent=5 // pred_check_branch
        %231 = sbr.rel (%p228) target = $region40
      $region39: #{tpu_custom_call.1} parent=5 // pred_region
        %s232 = ssub.s32 %s18, 1
        %s233 = sand.u32 %s31, 1
        %s234 = scalar_lea.sflag [#allocation3], %s233
        %s235 = sand.u32 %s31, 1
        %s236 = smul.addr %s235, 16
        %s237 = scalar_lea.vmem [#allocation2], %s236
        // Predicated region
        $region41: #{tpu_custom_call.1} parent=39 // pred_check
          %p238 = pneg %p44
        $region42: #{tpu_custom_call.1} parent=39 // pred_check_branch
          %240 = sbr.rel (%p238) target = $region44
        $region43: #{tpu_custom_call.1} parent=39 // pred_region
          %241 = dma.done %s234, 256
        $region44: #{tpu_custom_call.1} parent=39 // pred_fallthru
          _
        // Predicated region
        $region45: #{tpu_custom_call.1} parent=39 // pred_check
          %p242 = pneg %p65
        $region46: #{tpu_custom_call.1} parent=39 // pred_check_branch
          %244 = sbr.rel (%p242) target = $region48
        $region47: #{tpu_custom_call.1} parent=39 // pred_region
          %245 = dma.done [#allocation6], 256
        $region48: #{tpu_custom_call.1} parent=39 // pred_fallthru
          _
        // Predicated region
        $region49: #{tpu_custom_call.1} parent=39 // pred_check
          %p246 = pneg %p107
        $region50: #{tpu_custom_call.1} parent=39 // pred_check_branch
          %248 = sbr.rel (%p246) target = $region52
        $region51: #{tpu_custom_call.1} parent=39 // pred_region
          %249 = dma.done [#allocation6], 256
        $region52: #{tpu_custom_call.1} parent=39 // pred_fallthru
          _
        %s250 = sand.u32 %s31, 1
        %s251 = scalar_lea.sflag [#allocation3], %s250
        %s252 = sand.u32 %s31, 1
        %s253 = smul.addr %s252, 16
        %s254 = scalar_lea.vmem [#allocation2], %s253
        %p255 = pneg %p44
        %p256 = pneg %p41
        %p257 = pneg %p65
        %p258 = pneg %p62
        %p259 = pneg %p86
        %p260 = pneg %p83
        %p261 = pneg %p107
        %p262 = pneg %p104
        %p263 = pneg %p128
        %p264 = pneg %p125
        %p265 = pneg %p154
        %p266 = pneg %p151
        %s267 = sand.u32 %s141, 1
        %s268 = scalar_lea.sflag [#allocation4], %s267
        %s269 = sand.u32 %s141, 1
        %s270 = smul.addr %s269, 16
        %s271 = scalar_lea.vmem [#allocation8], %s270
        %s272 = smul.u32 4, %s23
        %s273 = smul.u32 4, %s23
        %v274 = vld [vmem:[%s237] sm:$0xf]
        %v275 = vld [vmem:[%s237 + $0x4] sm:$0xf]
        %v276 = vld [vmem:[%s237 + $0x8] sm:$0xf]
        %v277 = vld [vmem:[%s237 + $0xc] sm:$0xf]
        %vm278 = vcmask 125952
        %v279 = vsel %vm278, %v274, 0.0
        %v280 = vrot.slane %v279, 4
        %v281 = vadd.f32 %v279, %v280
        %v282 = vrot.slane %v281, 2
        %v283 = vadd.f32 %v281, %v282
        %v284 = vrot.slane %v283, 1
        %v285 = vadd.f32 %v283, %v284
        %v286 = vsel %vm278, %v275, 0.0
        %v287 = vrot.slane %v286, 4
        %v288 = vadd.f32 %v286, %v287
        %v289 = vrot.slane %v288, 2
        %v290 = vadd.f32 %v288, %v289
        %v291 = vrot.slane %v290, 1
        %v292 = vadd.f32 %v290, %v291
        %v293 = vsel %vm278, %v276, 0.0
        %v294 = vrot.slane %v293, 4
        %v295 = vadd.f32 %v293, %v294
        %v296 = vrot.slane %v295, 2
        %v297 = vadd.f32 %v295, %v296
        %v298 = vrot.slane %v297, 1
        %v299 = vadd.f32 %v297, %v298
        %v300 = vsel %vm278, %v277, 0.0
        %v301 = vrot.slane %v300, 4
        %v302 = vadd.f32 %v300, %v301
        %v303 = vrot.slane %v302, 2
        %v304 = vadd.f32 %v302, %v303
        %v305 = vrot.slane %v304, 1
        %v306 = vadd.f32 %v304, %v305
        %v307 = vmul.f32 %v285, 0.25
        %v308 = vmul.f32 %v292, 0.25
        %v309 = vmul.f32 %v299, 0.25
        %v310 = vmul.f32 %v306, 0.25
        %v311 = vld [vmem:[#allocation5] sm:$0xff]
        %v312 = vld [vmem:[#allocation5 + $0x8] sm:$0xff]
        %v313 = vld [vmem:[%s2] sm:$0x1]
        %v315 = vlaneseq
        %v316 = vshrl.u32 %v315, 7
        %v317 = vsub.s32 0, %v316
        %v318 = vrot.slane %v313, %v317
        %vm324 = vcmask 1041409
        %v325 = vsel %vm324, %v308, %v307
        %vm326 = vcmask 1042434
        %v327 = vsel %vm326, %v309, %v325
        %vm328 = vcmask 1043459
        %v329 = vsel %vm328, %v310, %v327
        %vm330 = vcmask 130048
        %v331 = vsel %vm330, %v329, 0
        %v334 = vsel %vm330, %v311, 0
        %v337 = vsel %vm330, %v312, 0
        %339 = vmatprep.subr.mxu0 0.0
        %340 = vmatpush1.xpose.msra.mxu0 %v334
        %341 = vmatprep.subr.mxu0 0.0
        %342 = vmatpush1.xpose.msra.mxu0 %v337
        %343 = vmatprep.subr.mxu0 0.0
        %344 = vmatpush1.xpose.msra.mxu0 0.0
        %345 = vmatprep.subr.mxu0 0.0
        %346 = vmatpush1.xpose.msra.mxu0 0.0
        %347 = vmatprep.subr.mxu0 0.0
        %348 = vmatpush1.xpose.msra.mxu0 0.0
        %349 = vmatprep.subr.mxu0 0.0
        %350 = vmatpush1.xpose.msra.mxu0 0.0
        %351 = vmatprep.subr.mxu0 0.0
        %352 = vmatpush1.xpose.msra.mxu0 0.0
        %353 = vmatprep.subr.mxu0 0.0
        %354 = vmatpush1.xpose.msra.mxu0 0.0
        %355 = vmatprep.subr.mxu0 0.0
        %356 = vmatpush1.xpose.msra.mxu0 0.0
        %357 = vmatprep.subr.mxu0 0.0
        %358 = vmatpush1.xpose.msra.mxu0 0.0
        %359 = vmatprep.subr.mxu0 0.0
        %360 = vmatpush1.xpose.msra.mxu0 0.0
        %361 = vmatprep.subr.mxu0 0.0
        %362 = vmatpush1.xpose.msra.mxu0 0.0
        %363 = vmatprep.subr.mxu0 0.0
        %364 = vmatpush1.xpose.msra.mxu0 0.0
        %365 = vmatprep.subr.mxu0 0.0
        %366 = vmatpush1.xpose.msra.mxu0 0.0
        %367 = vmatprep.subr.mxu0 0.0
        %368 = vmatpush1.xpose.msra.mxu0 0.0
        %369 = vmatprep.subr.mxu0 0.0
        %370 = vmatpush1.xpose.msra.mxu0 0.0
        %371 = vmatprep.subr.mxu0 0.0
        %372 = vmatpush1.xpose.msra.mxu0 0.0
        %373 = vmatprep.subr.mxu0 0.0
        %374 = vmatpush1.xpose.msra.mxu0 0.0
        %375 = vmatprep.subr.mxu0 0.0
        %376 = vmatpush1.xpose.msra.mxu0 0.0
        %377 = vmatprep.subr.mxu0 0.0
        %378 = vmatpush1.xpose.msra.mxu0 0.0
        %379 = vmatprep.subr.mxu0 0.0
        %380 = vmatpush1.xpose.msra.mxu0 0.0
        %381 = vmatprep.subr.mxu0 0.0
        %382 = vmatpush1.xpose.msra.mxu0 0.0
        %383 = vmatprep.subr.mxu0 0.0
        %384 = vmatpush1.xpose.msra.mxu0 0.0
        %385 = vmatprep.subr.mxu0 0.0
        %386 = vmatpush1.xpose.msra.mxu0 0.0
        %387 = vmatprep.subr.mxu0 0.0
        %388 = vmatpush1.xpose.msra.mxu0 0.0
        %389 = vmatprep.subr.mxu0 0.0
        %390 = vmatpush1.xpose.msra.mxu0 0.0
        %391 = vmatprep.subr.mxu0 0.0
        %392 = vmatpush1.xpose.msra.mxu0 0.0
        %393 = vmatprep.subr.mxu0 0.0
        %394 = vmatpush1.xpose.msra.mxu0 0.0
        %395 = vmatprep.subr.mxu0 0.0
        %396 = vmatpush1.xpose.msra.mxu0 0.0
        %397 = vmatprep.subr.mxu0 0.0
        %398 = vmatpush1.xpose.msra.mxu0 0.0
        %399 = vmatprep.subr.mxu0 0.0
        %400 = vmatpush1.xpose.msra.mxu0 0.0
        %401 = vmatprep.subr.mxu0 0.0
        %402 = vmatpush1.xpose.msra.mxu0 0.0
        %403 = vmatprep.mubr.f32.mxu0 0.0
        %404 = vmatmul.mubr.f32.gmra.mrb[0].mxu0 %v331
        %v405 = vpop.f32.mrb[0].mxu0
        %v406 = vadd.f32 %v318, %v405
        %v407 = vpop.f32.mrb[0].mxu0
        %408 = vdwg.mxu0
        %v409 = vxor.u32 %v406, 2147483648
        %v410 = vmul.f32 %v409, 1.442695
        %v411 = vpow.pop %v410
        %v412 = vadd.f32 %v411, 1.0
        %v413 = vrcp.pop %v412
        %v414 = vmul.f32 1.0, %v413
        %v415 = vld [vmem:[#allocation7] sm:$0xff]
        %v416 = vld [vmem:[#allocation7 + $0x8] sm:$0xff]
        %v417 = vld [vmem:[%s4] sm:$0x1]
        %v419 = vlaneseq
        %v420 = vshrl.u32 %v419, 7
        %v421 = vsub.s32 0, %v420
        %v422 = vrot.slane %v417, %v421
        %v425 = vsel %vm330, %v414, 0
        %v428 = vsel %vm330, %v415, 0
        %v431 = vsel %vm330, %v416, 0
        %433 = vmatprep.subr.mxu0 0.0
        %434 = vmatpush1.xpose.msra.mxu0 %v428
        %435 = vmatprep.subr.mxu0 0.0
        %436 = vmatpush1.xpose.msra.mxu0 %v431
        %437 = vmatprep.subr.mxu0 0.0
        %438 = vmatpush1.xpose.msra.mxu0 0.0
        %439 = vmatprep.subr.mxu0 0.0
        %440 = vmatpush1.xpose.msra.mxu0 0.0
        %441 = vmatprep.subr.mxu0 0.0
        %442 = vmatpush1.xpose.msra.mxu0 0.0
        %443 = vmatprep.subr.mxu0 0.0
        %444 = vmatpush1.xpose.msra.mxu0 0.0
        %445 = vmatprep.subr.mxu0 0.0
        %446 = vmatpush1.xpose.msra.mxu0 0.0
        %447 = vmatprep.subr.mxu0 0.0
        %448 = vmatpush1.xpose.msra.mxu0 0.0
        %449 = vmatprep.subr.mxu0 0.0
        %450 = vmatpush1.xpose.msra.mxu0 0.0
        %451 = vmatprep.subr.mxu0 0.0
        %452 = vmatpush1.xpose.msra.mxu0 0.0
        %453 = vmatprep.subr.mxu0 0.0
        %454 = vmatpush1.xpose.msra.mxu0 0.0
        %455 = vmatprep.subr.mxu0 0.0
        %456 = vmatpush1.xpose.msra.mxu0 0.0
        %457 = vmatprep.subr.mxu0 0.0
        %458 = vmatpush1.xpose.msra.mxu0 0.0
        %459 = vmatprep.subr.mxu0 0.0
        %460 = vmatpush1.xpose.msra.mxu0 0.0
        %461 = vmatprep.subr.mxu0 0.0
        %462 = vmatpush1.xpose.msra.mxu0 0.0
        %463 = vmatprep.subr.mxu0 0.0
        %464 = vmatpush1.xpose.msra.mxu0 0.0
        %465 = vmatprep.subr.mxu0 0.0
        %466 = vmatpush1.xpose.msra.mxu0 0.0
        %467 = vmatprep.subr.mxu0 0.0
        %468 = vmatpush1.xpose.msra.mxu0 0.0
        %469 = vmatprep.subr.mxu0 0.0
        %470 = vmatpush1.xpose.msra.mxu0 0.0
        %471 = vmatprep.subr.mxu0 0.0
        %472 = vmatpush1.xpose.msra.mxu0 0.0
        %473 = vmatprep.subr.mxu0 0.0
        %474 = vmatpush1.xpose.msra.mxu0 0.0
        %475 = vmatprep.subr.mxu0 0.0
        %476 = vmatpush1.xpose.msra.mxu0 0.0
        %477 = vmatprep.subr.mxu0 0.0
        %478 = vmatpush1.xpose.msra.mxu0 0.0
        %479 = vmatprep.subr.mxu0 0.0
        %480 = vmatpush1.xpose.msra.mxu0 0.0
        %481 = vmatprep.subr.mxu0 0.0
        %482 = vmatpush1.xpose.msra.mxu0 0.0
        %483 = vmatprep.subr.mxu0 0.0
        %484 = vmatpush1.xpose.msra.mxu0 0.0
        %485 = vmatprep.subr.mxu0 0.0
        %486 = vmatpush1.xpose.msra.mxu0 0.0
        %487 = vmatprep.subr.mxu0 0.0
        %488 = vmatpush1.xpose.msra.mxu0 0.0
        %489 = vmatprep.subr.mxu0 0.0
        %490 = vmatpush1.xpose.msra.mxu0 0.0
        %491 = vmatprep.subr.mxu0 0.0
        %492 = vmatpush1.xpose.msra.mxu0 0.0
        %493 = vmatprep.subr.mxu0 0.0
        %494 = vmatpush1.xpose.msra.mxu0 0.0
        %495 = vmatprep.subr.mxu0 0.0
        %496 = vmatpush1.xpose.msra.mxu0 0.0
        %497 = vmatprep.mubr.f32.mxu0 0.0
        %498 = vmatmul.mubr.f32.gmra.mrb[0].mxu0 %v425
        %v499 = vpop.f32.mrb[0].mxu0
        %v500 = vadd.f32 %v422, %v499
        %v501 = vpop.f32.mrb[0].mxu0
        %502 = vdwg.mxu0
        %v503 = vxor.u32 %v500, 2147483648
        %v504 = vmul.f32 %v503, 1.442695
        %v505 = vpow.pop %v504
        %v506 = vadd.f32 %v505, 1.0
        %v507 = vrcp.pop %v506
        %v508 = vmul.f32 1.0, %v507
        %v511 = vunpack.c.l.s4 1966171168
        %v512 = vunpack.c.0.s8 %v511
        %v513 = vlaneseq
        %v514 = vshrl.u32 %v513, 7
        %v515 = vsub.s32 %v512, %v514
        %v516 = vrot.slane %v508, %v515
        %v517 = vcombine.high %v516, %v516
        %v519 = vunpack.c.l.s4 1966171168
        %v520 = vunpack.c.0.s8 %v519
        %v521 = vlaneseq
        %v522 = vshrl.u32 %v521, 7
        %v523 = vsub.s32 %v520, %v522
        %v524 = vrot.slane %v516, %v523
        %v526 = vunpack.c.l.s4 1966171168
        %v527 = vunpack.c.0.s8 %v526
        %v528 = vlaneseq
        %v529 = vshrl.u32 %v528, 7
        %v530 = vsub.s32 %v527, %v529
        %v531 = vrot.slane %v517, %v530
        %v532 = vcombine.high %v524, %v524
        %v533 = vcombine.high %v531, %v531
        %v534 = vlaneseq
        %v535 = vshrl.u32 %v534, 7
        %v536 = vsub.s32 0, %v535
        %v537 = vrot.slane %v524, %v536
        %v538 = vlaneseq
        %v539 = vshrl.u32 %v538, 7
        %v540 = vsub.s32 0, %v539
        %v541 = vrot.slane %v531, %v540
        %v542 = vlaneseq
        %v543 = vshrl.u32 %v542, 7
        %v544 = vsub.s32 0, %v543
        %v545 = vrot.slane %v532, %v544
        %v546 = vlaneseq
        %v547 = vshrl.u32 %v546, 7
        %v548 = vsub.s32 0, %v547
        %v549 = vrot.slane %v533, %v548
        %v554 = vmul.f32 %v274, %v537
        %v555 = vmul.f32 %v275, %v541
        %v556 = vmul.f32 %v276, %v545
        %v557 = vmul.f32 %v277, %v549
        %558 = vst.msk [vmem:[%s271] sm:$0xf] %vm278, %v554
        %559 = vst.msk [vmem:[%s271 + $0x4] sm:$0xf] %vm278, %v555
        %560 = vst.msk [vmem:[%s271 + $0x8] sm:$0xf] %vm278, %v556
        %561 = vst.msk [vmem:[%s271 + $0xc] sm:$0xf] %vm278, %v557
        %s562 = sand.u32 %s141, 1
        %s563 = scalar_lea.sflag [#allocation4], %s562
        %s564 = sand.u32 %s141, 1
        %s565 = smul.addr %s564, 16
        %s566 = scalar_lea.vmem [#allocation8], %s565
        // Predicated region
        $region53: #{tpu_custom_call.1} parent=39 // pred_check
          %p567 = pneg %p151
        $region54: #{tpu_custom_call.1} parent=39 // pred_check_branch
          %569 = sbr.rel (%p567) target = $region56
        $region55: #{tpu_custom_call.1} parent=39 // pred_region
          %s570 = smul.u32 4, %s23
          %s572 = ssub.s32 256, 256
          %573 = vsyncadd %s563, %s572
          %s574 = smul.addr %s570, 64
          %s575 = scalar_lea.hbm %s5, %s574
          %s576 = sshll.u32 %s566, 4
          %s577 = int_to_ptr.vmem [resolvable:$true] %s576
          %582 = dma.vmem_to_hbm [thread:$0]  %s577, 256, %s575, %s563, 64, 64, 4
        $region56: #{tpu_custom_call.1} parent=39 // pred_fallthru
          _
      $region40: #{tpu_custom_call.1} parent=5 // pred_fallthru
        _
      %p583 = scmp.le.s32.totalorder 2, %s18
      // Predicated region
      $region57: #{tpu_custom_call.1} parent=5 // pred_check
        %p584 = pneg %p583
      $region58: #{tpu_custom_call.1} parent=5 // pred_check_branch
        %586 = sbr.rel (%p584) target = $region60
      $region59: #{tpu_custom_call.1} parent=5 // pred_region
        %s587 = ssub.s32 %s18, 2
        // Predicated region
        $region61: #{tpu_custom_call.1} parent=59 // pred_check
          %p588 = pneg %p157
        $region62: #{tpu_custom_call.1} parent=59 // pred_check_branch
          %590 = sbr.rel (%p588) target = $region64
        $region63: #{tpu_custom_call.1} parent=59 // pred_region
          %s591 = sand.u32 %s142, 1
          %s592 = scalar_lea.sflag [#allocation4], %s591
          %s593 = sand.u32 %s142, 1
          %s594 = smul.addr %s593, 16
          %s595 = scalar_lea.vmem [#allocation8], %s594
          %596 = dma.done %s592, 256
        $region64: #{tpu_custom_call.1} parent=59 // pred_fallthru
          _
      $region60: #{tpu_custom_call.1} parent=5 // pred_fallthru
        _
    $region6: #{tpu_custom_call.1} parent=1 // loop_footer
      %s22 = sadd.s32 1, %s18
    $region7: #{tpu_custom_call.1} parent=1 // loop_footer_branch
      %17 = sbr.rel target = $region3
    $region8: #{tpu_custom_call.1} parent=1 // loop_exit
      _
    %597 = vsyncpa [#allocation3], 1
    %s598 = scalar_lea.sflag [#allocation3], 1
    %599 = vsyncpa %s598, 1
    %600 = vsyncpa [#allocation6], 1
    %601 = vsyncpa [#allocation4], 1
    %s602 = scalar_lea.sflag [#allocation4], 1
    %603 = vsyncpa %s602, 1

</llo_original>
